<compile_context>
chip_gen: v6e
topology: v6e:2x2x1
jax: 0.10.0
libtpu: 0.0.40
codegen_flags: <defaults>
</compile_context>

<pallas_src>
import jax
import jax.numpy as jnp
from jax.experimental import pallas as pl
from jax.experimental.pallas import tpu as pltpu

# Logical (PyTorch) dims.
D_NOISE = 100
H1 = 256
H2 = 256
D_OUT = 28 * 28            # 784


def _round_up(x, m):
    return ((x + m - 1) // m) * m


def _pick_tm(batch):
    """Adaptive batch tile.

    - Small batches: one exact tile (rounded up to the 8-row sublane quantum),
      so B_pad == B for typical batch sizes and no wrapper slice is needed.
    - Large batches: 256-row tiles -> >=2 grid steps ("parallel" axis), so both
      v7x TensorCores get work and per-step VMEM stays small.
      (v5e note: TM could be raised to 512/1024 to amortize the ~0.35us/step
      overhead; 256 is a safe all-generation default.)
    """
    tm = _round_up(batch, 8)
    if tm <= 256:
        return tm
    return 256


def _g_kernel(z_ref, w1_ref, b1_ref, w2_ref, b2_ref, w3_ref, b3_ref, o_ref):
    # fc1 + ReLU   (dropout = identity in eval mode)
    h = jnp.dot(z_ref[...], w1_ref[...], preferred_element_type=jnp.float32)
    h = jnp.maximum(h + b1_ref[...], 0.0)
    # fc2 + ReLU
    h = jnp.dot(h.astype(jnp.bfloat16), w2_ref[...],
                preferred_element_type=jnp.float32)
    h = jnp.maximum(h + b2_ref[...], 0.0)
    # fc3 + tanh
    h = jnp.dot(h.astype(jnp.bfloat16), w3_ref[...],
                preferred_element_type=jnp.float32)
    o_ref[...] = jnp.tanh(h + b3_ref[...]).astype(o_ref.dtype)


@jax.jit
def generator_forward(z, kernel_params):
    """z: (B, 100) f32 -> (B, 784) f32.  kernel_params from prep_params()."""
    w1, b1, w2, b2, w3, b3 = kernel_params
    B = z.shape[0]

    TM = _pick_tm(B)
    n_tiles = pl.cdiv(B, TM)
    B_pad = n_tiles * TM

    # Feed z to the kernel in bf16 (MXU operand dtype); fuse any batch padding
    # with the cast. No lane padding: (TM, 100) blocks are legal since 100 is
    # the full last dim.
    if B_pad == B:
        z_in = z.astype(jnp.bfloat16)
    else:
        z_in = jnp.zeros((B_pad, D_NOISE), jnp.bfloat16)
        z_in = z_in.at[:B, :].set(z.astype(jnp.bfloat16))

    tile = lambda i: (i, 0)    # batch-tiled arrays
    const = lambda i: (0, 0)   # weights/biases resident across grid steps

    # VMEM budget: double-buffered I/O tiles + resident params + headroom for
    # the f32 intermediates; comfortably under the 32 MiB scoped default
    # (and v7x's 64 MiB physical VMEM).
    io_bytes = 2 * (TM * D_NOISE * 2 + TM * D_OUT * 4)
    param_bytes = 2 * (2 * (w1.size + w2.size + w3.size)
                       + 4 * (b1.size + b2.size + b3.size))
    vmem_limit = min(int(io_bytes + param_bytes + (12 << 20)), 32 << 20)

    cost = pl.CostEstimate(
        flops=2 * B_pad * (D_NOISE * H1 + H1 * H2 + H2 * D_OUT),
        transcendentals=B_pad * D_OUT,
        bytes_accessed=(z_in.size * 2 + B_pad * D_OUT * 4 + param_bytes // 2),
    )

    out = pl.pallas_call(
        _g_kernel,
        out_shape=jax.ShapeDtypeStruct((B_pad, D_OUT), jnp.float32),
        grid=(n_tiles,),
        in_specs=[
            pl.BlockSpec((TM, D_NOISE), tile),      # z tile (bf16, unpadded)
            pl.BlockSpec((D_NOISE, H1), const),     # W1 (resident)
            pl.BlockSpec((1, H1), const),           # b1
            pl.BlockSpec((H1, H2), const),          # W2
            pl.BlockSpec((1, H2), const),           # b2
            pl.BlockSpec((H2, D_OUT), const),       # W3 (784 cols, unpadded)
            pl.BlockSpec((1, D_OUT), const),        # b3
        ],
        out_specs=pl.BlockSpec((TM, D_OUT), tile),  # (TM, 784) f32, no lane pad
        compiler_params=pltpu.CompilerParams(
            dimension_semantics=("parallel",),      # v7x: shard tiles over 2 TCs
            vmem_limit_bytes=vmem_limit,
        ),
        cost_estimate=cost,
    )(z_in, w1, b1, w2, b2, w3, b3)

    # Only strip batch padding when it was actually added (B_pad == B for the
    # common case, so no post-kernel copy of the output).
    if B_pad != B:
        out = out[:B]
    return out


def init_params(key):
    """Deterministic synthetic params matching nn.Linear shapes (f32, logical).

    PyTorch stores Linear weights as (out, in); we keep them transposed
    (in, out) so the kernel does plain x @ W. Biases kept 2-D (1, out).
    """
    ks = jax.random.split(key, 6)

    def linear(kw, kb, fan_in, fan_out):
        bound = 1.0 / jnp.sqrt(fan_in)
        w = jax.random.uniform(kw, (fan_in, fan_out), jnp.float32, -bound, bound)
        b = jax.random.uniform(kb, (1, fan_out), jnp.float32, -bound, bound)
        return w, b

    w1, b1 = linear(ks[0], ks[1], D_NOISE, H1)
    w2, b2 = linear(ks[2], ks[3], H1, H2)
    w3, b3 = linear(ks[4], ks[5], H2, D_OUT)
    return (w1, b1, w2, b2, w3, b3)


def prep_params(params):
    """Cast matmul operands to bf16; biases stay f32 (f32 elementwise tail).

    No shape padding needed anymore: 100 and 784 are legal full-extent block
    dims, so semantics match the logical f32 params exactly up to bf16
    rounding of the weights.
    """
    w1, b1, w2, b2, w3, b3 = params
    return (w1.astype(jnp.bfloat16), b1,
            w2.astype(jnp.bfloat16), b2,
            w3.astype(jnp.bfloat16), b3)


def _reference(z, params):
    w1, b1, w2, b2, w3, b3 = params
    h = jnp.maximum(z @ w1 + b1, 0.0)
    h = jnp.maximum(h @ w2 + b2, 0.0)
    return jnp.tanh(h @ w3 + b3)


if __name__ == "__main__":
    key = jax.random.PRNGKey(0)
    k_param, k_z = jax.random.split(key)

    params = init_params(k_param)        # logical f32 params (PyTorch semantics)
    kparams = prep_params(params)        # bf16 matmul operands for the kernel

    batch = 8
    z = jax.random.normal(k_z, (batch, D_NOISE), jnp.float32)  # sample_z equivalent

    out = generator_forward(z, kparams)
    out = jax.block_until_ready(out)

    ref = _reference(z, params)
    assert out.shape == (batch, D_OUT), out.shape
    max_err = float(jnp.max(jnp.abs(out - ref)))
    # bf16 matmul operands vs pure-f32 reference -> loosened tolerance.
    assert max_err < 2e-2, max_err

    print("KERNEL_OK")
</pallas_src>

<mosaic_0001>
module attributes {stable_mosaic.version = 11 : i64} {
  func.func @_g_kernel(%arg0: i32, %arg1: memref<8x100xbf16, #tpu.memory_space<vmem>>, %arg2: memref<100x256xbf16, #tpu.memory_space<vmem>>, %arg3: memref<1x256xf32, #tpu.memory_space<vmem>>, %arg4: memref<256x256xbf16, #tpu.memory_space<vmem>>, %arg5: memref<1x256xf32, #tpu.memory_space<vmem>>, %arg6: memref<256x784xbf16, #tpu.memory_space<vmem>>, %arg7: memref<1x784xf32, #tpu.memory_space<vmem>>, %arg8: memref<8x784xf32, #tpu.memory_space<vmem>>) attributes {dimension_semantics = [#tpu.dimension_semantics<parallel>], iteration_bounds = array<i64: 1>, scalar_prefetch = 0 : i64, scratch_operands = 0 : i64, tpu.core_type = #tpu.core_type<tc>, window_params = [{transform_indices = @transform_0, window_bounds = array<i64: 8, 100>}, {pipeline_mode = #tpu.pipeline_mode<synchronous>, transform_indices = @transform_1, window_bounds = array<i64: 100, 256>}, {pipeline_mode = #tpu.pipeline_mode<synchronous>, transform_indices = @transform_2, window_bounds = array<i64: 1, 256>}, {pipeline_mode = #tpu.pipeline_mode<synchronous>, transform_indices = @transform_3, window_bounds = array<i64: 256, 256>}, {pipeline_mode = #tpu.pipeline_mode<synchronous>, transform_indices = @transform_4, window_bounds = array<i64: 1, 256>}, {pipeline_mode = #tpu.pipeline_mode<synchronous>, transform_indices = @transform_5, window_bounds = array<i64: 256, 784>}, {pipeline_mode = #tpu.pipeline_mode<synchronous>, transform_indices = @transform_6, window_bounds = array<i64: 1, 784>}, {transform_indices = @transform_7, window_bounds = array<i64: 8, 784>}]} {
    %c0 = arith.constant 0 : index
    %c0_0 = arith.constant 0 : index
    %0 = vector.load %arg1[%c0, %c0_0] : memref<8x100xbf16, #tpu.memory_space<vmem>>, vector<8x100xbf16>
    %c0_1 = arith.constant 0 : index
    %c0_2 = arith.constant 0 : index
    %1 = vector.load %arg2[%c0_1, %c0_2] : memref<100x256xbf16, #tpu.memory_space<vmem>>, vector<100x256xbf16>
    %cst = arith.constant dense<0.000000e+00> : vector<8x256xf32>
    %2 = tpu.matmul %0, %1, %cst {dimension_numbers = #tpu.dot_dimension_numbers<[1], [0], [0], [1], [0, 0, 1, 1], [], []>} : vector<8x100xbf16>, vector<100x256xbf16>, vector<8x256xf32> -> vector<8x256xf32>
    %c0_3 = arith.constant 0 : index
    %c0_4 = arith.constant 0 : index
    %3 = vector.load %arg3[%c0_3, %c0_4] : memref<1x256xf32, #tpu.memory_space<vmem>>, vector<1x256xf32>
    %4 = vector.broadcast %3 : vector<1x256xf32> to vector<8x256xf32>
    %5 = arith.addf %2, %4 : vector<8x256xf32>
    %cst_5 = arith.constant 0.000000e+00 : f32
    %6 = vector.broadcast %cst_5 : f32 to vector<8x256xf32>
    %7 = arith.maximumf %5, %6 : vector<8x256xf32>
    %8 = arith.truncf %7 : vector<8x256xf32> to vector<8x256xbf16>
    %c0_6 = arith.constant 0 : index
    %c0_7 = arith.constant 0 : index
    %9 = vector.load %arg4[%c0_6, %c0_7] : memref<256x256xbf16, #tpu.memory_space<vmem>>, vector<256x256xbf16>
    %cst_8 = arith.constant dense<0.000000e+00> : vector<8x256xf32>
    %10 = tpu.matmul %8, %9, %cst_8 {dimension_numbers = #tpu.dot_dimension_numbers<[1], [0], [0], [1], [0, 0, 1, 1], [], []>} : vector<8x256xbf16>, vector<256x256xbf16>, vector<8x256xf32> -> vector<8x256xf32>
    %c0_9 = arith.constant 0 : index
    %c0_10 = arith.constant 0 : index
    %11 = vector.load %arg5[%c0_9, %c0_10] : memref<1x256xf32, #tpu.memory_space<vmem>>, vector<1x256xf32>
    %12 = vector.broadcast %11 : vector<1x256xf32> to vector<8x256xf32>
    %13 = arith.addf %10, %12 : vector<8x256xf32>
    %cst_11 = arith.constant 0.000000e+00 : f32
    %14 = vector.broadcast %cst_11 : f32 to vector<8x256xf32>
    %15 = arith.maximumf %13, %14 : vector<8x256xf32>
    %16 = arith.truncf %15 : vector<8x256xf32> to vector<8x256xbf16>
    %c0_12 = arith.constant 0 : index
    %c0_13 = arith.constant 0 : index
    %17 = vector.load %arg6[%c0_12, %c0_13] : memref<256x784xbf16, #tpu.memory_space<vmem>>, vector<256x784xbf16>
    %cst_14 = arith.constant dense<0.000000e+00> : vector<8x784xf32>
    %18 = tpu.matmul %16, %17, %cst_14 {dimension_numbers = #tpu.dot_dimension_numbers<[1], [0], [0], [1], [0, 0, 1, 1], [], []>} : vector<8x256xbf16>, vector<256x784xbf16>, vector<8x784xf32> -> vector<8x784xf32>
    %c0_15 = arith.constant 0 : index
    %c0_16 = arith.constant 0 : index
    %19 = vector.load %arg7[%c0_15, %c0_16] : memref<1x784xf32, #tpu.memory_space<vmem>>, vector<1x784xf32>
    %20 = vector.broadcast %19 : vector<1x784xf32> to vector<8x784xf32>
    %21 = arith.addf %18, %20 : vector<8x784xf32>
    %22 = math.tanh %21 : vector<8x784xf32>
    %c0_17 = arith.constant 0 : index
    %c0_18 = arith.constant 0 : index
    %23 = vector.load %arg8[%c0_17, %c0_18] : memref<8x784xf32, #tpu.memory_space<vmem>>, vector<8x784xf32>
    tpu.vector_store %arg8[%c0_17, %c0_18], %22 {strides = array<i32>} : memref<8x784xf32, #tpu.memory_space<vmem>>, vector<8x784xf32>,
    return
  }
  func.func @transform_0(%arg0: i32) -> (i32, i32) {
    %c0_i32 = arith.constant 0 : i32
    %c0_i32_0 = arith.constant 0 : i32
    return %arg0, %c0_i32 : i32, i32
  }
  func.func @transform_1(%arg0: i32) -> (i32, i32) {
    %c0_i32 = arith.constant 0 : i32
    %c0_i32_0 = arith.constant 0 : i32
    %c0_i32_1 = arith.constant 0 : i32
    return %c0_i32, %c0_i32_0 : i32, i32
  }
  func.func @transform_2(%arg0: i32) -> (i32, i32) {
    %c0_i32 = arith.constant 0 : i32
    %c0_i32_0 = arith.constant 0 : i32
    %c0_i32_1 = arith.constant 0 : i32
    return %c0_i32, %c0_i32_0 : i32, i32
  }
  func.func @transform_3(%arg0: i32) -> (i32, i32) {
    %c0_i32 = arith.constant 0 : i32
    %c0_i32_0 = arith.constant 0 : i32
    %c0_i32_1 = arith.constant 0 : i32
    return %c0_i32, %c0_i32_0 : i32, i32
  }
  func.func @transform_4(%arg0: i32) -> (i32, i32) {
    %c0_i32 = arith.constant 0 : i32
    %c0_i32_0 = arith.constant 0 : i32
    %c0_i32_1 = arith.constant 0 : i32
    return %c0_i32, %c0_i32_0 : i32, i32
  }
  func.func @transform_5(%arg0: i32) -> (i32, i32) {
    %c0_i32 = arith.constant 0 : i32
    %c0_i32_0 = arith.constant 0 : i32
    %c0_i32_1 = arith.constant 0 : i32
    return %c0_i32, %c0_i32_0 : i32, i32
  }
  func.func @transform_6(%arg0: i32) -> (i32, i32) {
    %c0_i32 = arith.constant 0 : i32
    %c0_i32_0 = arith.constant 0 : i32
    %c0_i32_1 = arith.constant 0 : i32
    return %c0_i32, %c0_i32_0 : i32, i32
  }
  func.func @transform_7(%arg0: i32) -> (i32, i32) {
    %c0_i32 = arith.constant 0 : i32
    %c0_i32_0 = arith.constant 0 : i32
    return %arg0, %c0_i32 : i32, i32
  }
}

</mosaic_0001>

<llo_original>
// kernel: generator_forward.1
$region0: #{generator_forward.1}
  #allocation0 [shape = 'u32[]', space=smem, size = 0x4, offset = 0x4, fixed_abs, tag = 'smem constant byte address 0x4 - core index']
  #allocation1 [shape = 'u32[144,128]{1,0:T(1,128)}', space=vmem, size = 0x12000, scoped, tag = 'internal scratch']
  %s0 = inlined_call_operand.vmem [shape: bf16[8,100], index: 0, kind: input, shape index: {}]
  %s1 = inlined_call_operand.vmem [shape: bf16[100,256], index: 1, kind: input, shape index: {}]
  %s2 = inlined_call_operand.vmem [shape: f32[1,256], index: 2, kind: input, shape index: {}]
  %s3 = inlined_call_operand.vmem [shape: bf16[256,256], index: 3, kind: input, shape index: {}]
  %s4 = inlined_call_operand.vmem [shape: f32[1,256], index: 4, kind: input, shape index: {}]
  %s5 = inlined_call_operand.vmem [shape: bf16[256,784], index: 5, kind: input, shape index: {}]
  %s6 = inlined_call_operand.vmem [shape: f32[1,784], index: 6, kind: input, shape index: {}]
  %s7 = inlined_call_operand.hbm [shape: f32[8,784], index: 7, kind: output, shape index: {}]
  %s8 = sld [smem:[#allocation0]]
  $region38: #{generator_forward.1} parent=0
    _
  %s10 = ssub.s32 1, %s8
  %s11 = scalar_select 0, %s10, %s8
  $region1: #{generator_forward.1} parent=0
    #allocation2 [shape = 'u8[28672]{0}', space=vmem, size = 0x7000, scoped, tag = 'output window, operand 0, single buffered']
    #allocation3 [shape = 's32[1]{0}', space=sflag, size = 0x4, scoped, tag = 'scoped memory for generator_forward.1']
    %12 = vsyncpa [#allocation3], 0
    // Predicated region
    $region2: #{generator_forward.1} parent=1 // pred_check
      _
    $region3: #{generator_forward.1} parent=1 // pred_check_branch
      %14 = sbr.rel (0) target = $region5
    $region4: #{generator_forward.1} parent=1 // pred_region
      _
    $region5: #{generator_forward.1} parent=1 // pred_fallthru
      _
    // Predicated region
    $region6: #{generator_forward.1} parent=1 // pred_check
      _
    $region7: #{generator_forward.1} parent=1 // pred_check_branch
      %16 = sbr.rel (0) target = $region9
    $region8: #{generator_forward.1} parent=1 // pred_region
      _
    $region9: #{generator_forward.1} parent=1 // pred_fallthru
      _
    // Predicated region
    $region10: #{generator_forward.1} parent=1 // pred_check
      _
    $region11: #{generator_forward.1} parent=1 // pred_check_branch
      %18 = sbr.rel (0) target = $region13
    $region12: #{generator_forward.1} parent=1 // pred_region
      _
    $region13: #{generator_forward.1} parent=1 // pred_fallthru
      _
    // Predicated region
    $region14: #{generator_forward.1} parent=1 // pred_check
      _
    $region15: #{generator_forward.1} parent=1 // pred_check_branch
      %20 = sbr.rel (0) target = $region17
    $region16: #{generator_forward.1} parent=1 // pred_region
      _
    $region17: #{generator_forward.1} parent=1 // pred_fallthru
      _
    // Predicated region
    $region18: #{generator_forward.1} parent=1 // pred_check
      _
    $region19: #{generator_forward.1} parent=1 // pred_check_branch
      %22 = sbr.rel (0) target = $region21
    $region20: #{generator_forward.1} parent=1 // pred_region
      _
    $region21: #{generator_forward.1} parent=1 // pred_fallthru
      _
    // Predicated region
    $region22: #{generator_forward.1} parent=1 // pred_check
      _
    $region23: #{generator_forward.1} parent=1 // pred_check_branch
      %24 = sbr.rel (0) target = $region25
    $region24: #{generator_forward.1} parent=1 // pred_region
      _
    $region25: #{generator_forward.1} parent=1 // pred_fallthru
      _
    // Predicated region
    $region26: #{generator_forward.1} parent=1 // pred_check
      _
    $region27: #{generator_forward.1} parent=1 // pred_check_branch
      %26 = sbr.rel (0) target = $region29
    $region28: #{generator_forward.1} parent=1 // pred_region
      _
    $region29: #{generator_forward.1} parent=1 // pred_fallthru
      _
    %v28 = vld [vmem:[%s0] sm:$0xf]
    %v29 = vld [vmem:[%s1] sm:$0xff]
    %v30 = vld [vmem:[%s1 + $0x8] sm:$0xff]
    %v31 = vld [vmem:[%s1 + $0x10] sm:$0xff]
    %v32 = vld [vmem:[%s1 + $0x18] sm:$0xff]
    %v33 = vld [vmem:[%s1 + $0x20] sm:$0xff]
    %v34 = vld [vmem:[%s1 + $0x28] sm:$0xff]
    %v35 = vld [vmem:[%s1 + $0x30] sm:$0xff]
    %v36 = vld [vmem:[%s1 + $0x38] sm:$0xff]
    %v37 = vld [vmem:[%s1 + $0x40] sm:$0xff]
    %v38 = vld [vmem:[%s1 + $0x48] sm:$0xff]
    %v39 = vld [vmem:[%s1 + $0x50] sm:$0xff]
    %v40 = vld [vmem:[%s1 + $0x58] sm:$0xff]
    %v41 = vld [vmem:[%s1 + $0x60] sm:$0x33]
    %v42 = vld [vmem:[%s2] sm:$0x3]
    %v44 = vlaneseq
    %v45 = vshrl.u32 %v44, 7
    %v46 = vsub.s32 0, %v45
    %v47 = vrot.slane %v42, %v46
    %v48 = vlaneseq
    %v49 = vshrl.u32 %v48, 7
    %v50 = vsub.s32 1, %v49
    %v51 = vrot.slane %v42, %v50
    %v67 = vunpack.c.l.b16 %v29
    %v68 = vunpack.c.h.b16 %v29
    %v69 = vunpack.c.l.b16 %v30
    %v70 = vunpack.c.h.b16 %v30
    %v71 = vunpack.c.l.b16 %v31
    %v72 = vunpack.c.h.b16 %v31
    %v73 = vunpack.c.l.b16 %v32
    %v74 = vunpack.c.h.b16 %v32
    %v75 = vunpack.c.l.b16 %v33
    %v76 = vunpack.c.h.b16 %v33
    %v77 = vunpack.c.l.b16 %v34
    %v78 = vunpack.c.h.b16 %v34
    %v79 = vunpack.c.l.b16 %v35
    %v80 = vunpack.c.h.b16 %v35
    %v81 = vunpack.c.l.b16 %v36
    %v82 = vunpack.c.h.b16 %v36
    %v83 = vunpack.c.l.b16 %v37
    %v84 = vunpack.c.h.b16 %v37
    %v85 = vunpack.c.l.b16 %v38
    %v86 = vunpack.c.h.b16 %v38
    %v87 = vunpack.c.l.b16 %v39
    %v88 = vunpack.c.h.b16 %v39
    %v89 = vunpack.c.l.b16 %v40
    %v90 = vunpack.c.h.b16 %v40
    %v91 = vunpack.c.l.b16 %v41
    %v92 = vunpack.c.h.b16 %v41
    %v93 = vpack.c.b16 %v69, %v67
    %v94 = vpack.c.b16 %v70, %v68
    %v95 = vpack.c.b16 %v73, %v71
    %v96 = vpack.c.b16 %v74, %v72
    %v97 = vpack.c.b16 %v77, %v75
    %v98 = vpack.c.b16 %v78, %v76
    %v99 = vpack.c.b16 %v81, %v79
    %v100 = vpack.c.b16 %v82, %v80
    %v101 = vpack.c.b16 %v85, %v83
    %v102 = vpack.c.b16 %v86, %v84
    %v103 = vpack.c.b16 %v89, %v87
    %v104 = vpack.c.b16 %v90, %v88
    %v105 = vpack.c.b16 %v91, %v91
    %v106 = vpack.c.b16 %v92, %v92
    %vm119 = vcmask 818176
    %v121 = vsel %vm119, %v28, 0
    %vm123 = vcmask 1041408
    %v125 = vsel %vm123, %v105, 0
    %v128 = vsel %vm123, %v106, 0
    %130 = vmatprep.subr.bf16.mxu0 0
    %131 = vmatpush1.bf16.msra.mxu0 0
    %132 = vmatprep.subr.bf16.mxu0 %v128
    %133 = vmatpush1.bf16.msra.mxu0 %v125
    %134 = vmatprep.subr.bf16.mxu0 %v104
    %135 = vmatpush1.bf16.msra.mxu0 %v103
    %136 = vmatprep.subr.bf16.mxu0 %v102
    %137 = vmatpush1.bf16.msra.mxu0 %v101
    %138 = vmatprep.subr.bf16.mxu0 %v100
    %139 = vmatpush1.bf16.msra.mxu0 %v99
    %140 = vmatprep.subr.bf16.mxu0 %v98
    %141 = vmatpush1.bf16.msra.mxu0 %v97
    %142 = vmatprep.subr.bf16.mxu0 %v96
    %143 = vmatpush1.bf16.msra.mxu0 %v95
    %144 = vmatprep.subr.bf16.mxu0 %v94
    %145 = vmatpush1.bf16.msra.mxu0 %v93
    %146 = vmatprep.subr.bf16.mxu0 0
    %147 = vmatpush2.bf16.msra.mxu0 0
    %148 = vmatprep.subr.bf16.mxu0 0
    %149 = vmatpush2.bf16.msra.mxu0 0
    %150 = vmatprep.subr.bf16.mxu0 0
    %151 = vmatpush2.bf16.msra.mxu0 0
    %152 = vmatprep.subr.bf16.mxu0 0
    %153 = vmatpush2.bf16.msra.mxu0 0
    %154 = vmatprep.subr.bf16.mxu0 0
    %155 = vmatpush2.bf16.msra.mxu0 0
    %156 = vmatprep.subr.bf16.mxu0 0
    %157 = vmatpush2.bf16.msra.mxu0 0
    %158 = vmatprep.subr.bf16.mxu0 0
    %159 = vmatpush2.bf16.msra.mxu0 0
    %160 = vmatprep.subr.bf16.mxu0 0
    %161 = vmatpush2.bf16.msra.mxu0 0
    %162 = vmatprep.mubr.bf16.mxu0 0
    %163 = vmatmul.mubr.bf16.gmra.mxu0 %v121
    %v164 = vpop.f32.mrf.mxu0
    %v165 = vadd.f32 %v47, %v164
    %v166 = vpop.f32.mrf.mxu0
    %v167 = vadd.f32 %v51, %v166
    %v168 = vpop.f32.mrf.mxu0
    %v169 = vpop.f32.mrf.mxu0
    %170 = vdwg.mxu0
    %v171 = vmax.f32 %v165, 0.0
    %v172 = vmax.f32 %v167, 0.0
    %v173 = vpack.c.bf16 %v171, %v171
    %v174 = vpack.c.bf16 %v172, %v172
    %v175 = vld [vmem:[%s3] sm:$0xff]
    %v176 = vld [vmem:[%s3 + $0x8] sm:$0xff]
    %v177 = vld [vmem:[%s3 + $0x10] sm:$0xff]
    %v178 = vld [vmem:[%s3 + $0x18] sm:$0xff]
    %v179 = vld [vmem:[%s3 + $0x20] sm:$0xff]
    %v180 = vld [vmem:[%s3 + $0x28] sm:$0xff]
    %v181 = vld [vmem:[%s3 + $0x30] sm:$0xff]
    %v182 = vld [vmem:[%s3 + $0x38] sm:$0xff]
    %v183 = vld [vmem:[%s3 + $0x40] sm:$0xff]
    %v184 = vld [vmem:[%s3 + $0x48] sm:$0xff]
    %v185 = vld [vmem:[%s3 + $0x50] sm:$0xff]
    %v186 = vld [vmem:[%s3 + $0x58] sm:$0xff]
    %v187 = vld [vmem:[%s3 + $0x60] sm:$0xff]
    %v188 = vld [vmem:[%s3 + $0x68] sm:$0xff]
    %v189 = vld [vmem:[%s3 + $0x70] sm:$0xff]
    %v190 = vld [vmem:[%s3 + $0x78] sm:$0xff]
    %v191 = vld [vmem:[%s3 + $0x80] sm:$0xff]
    %v192 = vld [vmem:[%s3 + $0x88] sm:$0xff]
    %v193 = vld [vmem:[%s3 + $0x90] sm:$0xff]
    %v194 = vld [vmem:[%s3 + $0x98] sm:$0xff]
    %v195 = vld [vmem:[%s3 + $0xa0] sm:$0xff]
    %v196 = vld [vmem:[%s3 + $0xa8] sm:$0xff]
    %v197 = vld [vmem:[%s3 + $0xb0] sm:$0xff]
    %v198 = vld [vmem:[%s3 + $0xb8] sm:$0xff]
    %v199 = vld [vmem:[%s3 + $0xc0] sm:$0xff]
    %v200 = vld [vmem:[%s3 + $0xc8] sm:$0xff]
    %v201 = vld [vmem:[%s3 + $0xd0] sm:$0xff]
    %v202 = vld [vmem:[%s3 + $0xd8] sm:$0xff]
    %v203 = vld [vmem:[%s3 + $0xe0] sm:$0xff]
    %v204 = vld [vmem:[%s3 + $0xe8] sm:$0xff]
    %v205 = vld [vmem:[%s3 + $0xf0] sm:$0xff]
    %v206 = vld [vmem:[%s3 + $0xf8] sm:$0xff]
    %v207 = vld [vmem:[%s4] sm:$0x3]
    %v209 = vlaneseq
    %v210 = vshrl.u32 %v209, 7
    %v211 = vsub.s32 0, %v210
    %v212 = vrot.slane %v207, %v211
    %v213 = vlaneseq
    %v214 = vshrl.u32 %v213, 7
    %v215 = vsub.s32 1, %v214
    %v216 = vrot.slane %v207, %v215
    %v251 = vunpack.c.l.b16 %v175
    %v252 = vunpack.c.h.b16 %v175
    %v253 = vunpack.c.l.b16 %v176
    %v254 = vunpack.c.h.b16 %v176
    %v255 = vunpack.c.l.b16 %v177
    %v256 = vunpack.c.h.b16 %v177
    %v257 = vunpack.c.l.b16 %v178
    %v258 = vunpack.c.h.b16 %v178
    %v259 = vunpack.c.l.b16 %v179
    %v260 = vunpack.c.h.b16 %v179
    %v261 = vunpack.c.l.b16 %v180
    %v262 = vunpack.c.h.b16 %v180
    %v263 = vunpack.c.l.b16 %v181
    %v264 = vunpack.c.h.b16 %v181
    %v265 = vunpack.c.l.b16 %v182
    %v266 = vunpack.c.h.b16 %v182
    %v267 = vunpack.c.l.b16 %v183
    %v268 = vunpack.c.h.b16 %v183
    %v269 = vunpack.c.l.b16 %v184
    %v270 = vunpack.c.h.b16 %v184
    %v271 = vunpack.c.l.b16 %v185
    %v272 = vunpack.c.h.b16 %v185
    %v273 = vunpack.c.l.b16 %v186
    %v274 = vunpack.c.h.b16 %v186
    %v275 = vunpack.c.l.b16 %v187
    %v276 = vunpack.c.h.b16 %v187
    %v277 = vunpack.c.l.b16 %v188
    %v278 = vunpack.c.h.b16 %v188
    %v279 = vunpack.c.l.b16 %v189
    %v280 = vunpack.c.h.b16 %v189
    %v281 = vunpack.c.l.b16 %v190
    %v282 = vunpack.c.h.b16 %v190
    %v283 = vunpack.c.l.b16 %v191
    %v284 = vunpack.c.h.b16 %v191
    %v285 = vunpack.c.l.b16 %v192
    %v286 = vunpack.c.h.b16 %v192
    %v287 = vunpack.c.l.b16 %v193
    %v288 = vunpack.c.h.b16 %v193
    %v289 = vunpack.c.l.b16 %v194
    %v290 = vunpack.c.h.b16 %v194
    %v291 = vunpack.c.l.b16 %v195
    %v292 = vunpack.c.h.b16 %v195
    %v293 = vunpack.c.l.b16 %v196
    %v294 = vunpack.c.h.b16 %v196
    %v295 = vunpack.c.l.b16 %v197
    %v296 = vunpack.c.h.b16 %v197
    %v297 = vunpack.c.l.b16 %v198
    %v298 = vunpack.c.h.b16 %v198
    %v299 = vunpack.c.l.b16 %v199
    %v300 = vunpack.c.h.b16 %v199
    %v301 = vunpack.c.l.b16 %v200
    %v302 = vunpack.c.h.b16 %v200
    %v303 = vunpack.c.l.b16 %v201
    %v304 = vunpack.c.h.b16 %v201
    %v305 = vunpack.c.l.b16 %v202
    %v306 = vunpack.c.h.b16 %v202
    %v307 = vunpack.c.l.b16 %v203
    %v308 = vunpack.c.h.b16 %v203
    %v309 = vunpack.c.l.b16 %v204
    %v310 = vunpack.c.h.b16 %v204
    %v311 = vunpack.c.l.b16 %v205
    %v312 = vunpack.c.h.b16 %v205
    %v313 = vunpack.c.l.b16 %v206
    %v314 = vunpack.c.h.b16 %v206
    %v315 = vpack.c.b16 %v253, %v251
    %v316 = vpack.c.b16 %v254, %v252
    %v317 = vpack.c.b16 %v257, %v255
    %v318 = vpack.c.b16 %v258, %v256
    %v319 = vpack.c.b16 %v261, %v259
    %v320 = vpack.c.b16 %v262, %v260
    %v321 = vpack.c.b16 %v265, %v263
    %v322 = vpack.c.b16 %v266, %v264
    %v323 = vpack.c.b16 %v269, %v267
    %v324 = vpack.c.b16 %v270, %v268
    %v325 = vpack.c.b16 %v273, %v271
    %v326 = vpack.c.b16 %v274, %v272
    %v327 = vpack.c.b16 %v277, %v275
    %v328 = vpack.c.b16 %v278, %v276
    %v329 = vpack.c.b16 %v281, %v279
    %v330 = vpack.c.b16 %v282, %v280
    %v331 = vpack.c.b16 %v285, %v283
    %v332 = vpack.c.b16 %v286, %v284
    %v333 = vpack.c.b16 %v289, %v287
    %v334 = vpack.c.b16 %v290, %v288
    %v335 = vpack.c.b16 %v293, %v291
    %v336 = vpack.c.b16 %v294, %v292
    %v337 = vpack.c.b16 %v297, %v295
    %v338 = vpack.c.b16 %v298, %v296
    %v339 = vpack.c.b16 %v301, %v299
    %v340 = vpack.c.b16 %v302, %v300
    %v341 = vpack.c.b16 %v305, %v303
    %v342 = vpack.c.b16 %v306, %v304
    %v343 = vpack.c.b16 %v309, %v307
    %v344 = vpack.c.b16 %v310, %v308
    %v345 = vpack.c.b16 %v313, %v311
    %v346 = vpack.c.b16 %v314, %v312
    %379 = vmatprep.subr.bf16.mxu0 %v330
    %380 = vmatpush1.bf16.msra.mxu0 %v329
    %381 = vmatprep.subr.bf16.mxu0 %v328
    %382 = vmatpush1.bf16.msra.mxu0 %v327
    %383 = vmatprep.subr.bf16.mxu0 %v326
    %384 = vmatpush1.bf16.msra.mxu0 %v325
    %385 = vmatprep.subr.bf16.mxu0 %v324
    %386 = vmatpush1.bf16.msra.mxu0 %v323
    %387 = vmatprep.subr.bf16.mxu0 %v322
    %388 = vmatpush1.bf16.msra.mxu0 %v321
    %389 = vmatprep.subr.bf16.mxu0 %v320
    %390 = vmatpush1.bf16.msra.mxu0 %v319
    %391 = vmatprep.subr.bf16.mxu0 %v318
    %392 = vmatpush1.bf16.msra.mxu0 %v317
    %393 = vmatprep.subr.bf16.mxu0 %v316
    %394 = vmatpush1.bf16.msra.mxu0 %v315
    %395 = vmatprep.subr.bf16.mxu0 %v346
    %396 = vmatpush2.bf16.msra.mxu0 %v345
    %397 = vmatprep.subr.bf16.mxu0 %v344
    %398 = vmatpush2.bf16.msra.mxu0 %v343
    %399 = vmatprep.subr.bf16.mxu0 %v342
    %400 = vmatpush2.bf16.msra.mxu0 %v341
    %401 = vmatprep.subr.bf16.mxu0 %v340
    %402 = vmatpush2.bf16.msra.mxu0 %v339
    %403 = vmatprep.subr.bf16.mxu0 %v338
    %404 = vmatpush2.bf16.msra.mxu0 %v337
    %405 = vmatprep.subr.bf16.mxu0 %v336
    %406 = vmatpush2.bf16.msra.mxu0 %v335
    %407 = vmatprep.subr.bf16.mxu0 %v334
    %408 = vmatpush2.bf16.msra.mxu0 %v333
    %409 = vmatprep.subr.bf16.mxu0 %v332
    %410 = vmatpush2.bf16.msra.mxu0 %v331
    %411 = vmatprep.mubr.bf16.mxu0 %v174
    %412 = vmatmul.mubr.bf16.gmra.mxu0 %v173
    %v413 = vpop.f32.mrf.mxu0
    %v414 = vadd.f32 %v212, %v413
    %v415 = vpop.f32.mrf.mxu0
    %v416 = vadd.f32 %v216, %v415
    %v417 = vpop.f32.mrf.mxu0
    %v418 = vpop.f32.mrf.mxu0
    %419 = vdwg.mxu0
    %v420 = vmax.f32 %v414, 0.0
    %v421 = vmax.f32 %v416, 0.0
    %v422 = vpack.c.bf16 %v420, %v420
    %v423 = vpack.c.bf16 %v421, %v421
    %v424 = vld [vmem:[%s5] sm:$0xff]
    %v425 = vld [vmem:[%s5 + $0x8] sm:$0xff]
    %v426 = vld [vmem:[%s5 + $0x10] sm:$0xff]
    %v427 = vld [vmem:[%s5 + $0x18] sm:$0xf]
    %v428 = vld [vmem:[%s5 + $0x1c] sm:$0xff]
    %v429 = vld [vmem:[%s5 + $0x24] sm:$0xff]
    %v430 = vld [vmem:[%s5 + $0x2c] sm:$0xff]
    %v431 = vld [vmem:[%s5 + $0x34] sm:$0xf]
    %v432 = vld [vmem:[%s5 + $0x38] sm:$0xff]
    %v433 = vld [vmem:[%s5 + $0x40] sm:$0xff]
    %v434 = vld [vmem:[%s5 + $0x48] sm:$0xff]
    %v435 = vld [vmem:[%s5 + $0x50] sm:$0xf]
    %v436 = vld [vmem:[%s5 + $0x54] sm:$0xff]
    %v437 = vld [vmem:[%s5 + $0x5c] sm:$0xff]
    %v438 = vld [vmem:[%s5 + $0x64] sm:$0xff]
    %v439 = vld [vmem:[%s5 + $0x6c] sm:$0xf]
    %v440 = vld [vmem:[%s5 + $0x70] sm:$0xff]
    %v441 = vld [vmem:[%s5 + $0x78] sm:$0xff]
    %v442 = vld [vmem:[%s5 + $0x80] sm:$0xff]
    %v443 = vld [vmem:[%s5 + $0x88] sm:$0xf]
    %v444 = vld [vmem:[%s5 + $0x8c] sm:$0xff]
    %v445 = vld [vmem:[%s5 + $0x94] sm:$0xff]
    %v446 = vld [vmem:[%s5 + $0x9c] sm:$0xff]
    %v447 = vld [vmem:[%s5 + $0xa4] sm:$0xf]
    %v448 = vld [vmem:[%s5 + $0xa8] sm:$0xff]
    %v449 = vld [vmem:[%s5 + $0xb0] sm:$0xff]
    %v450 = vld [vmem:[%s5 + $0xb8] sm:$0xff]
    %v451 = vld [vmem:[%s5 + $0xc0] sm:$0xf]
    %v452 = vld [vmem:[%s5 + $0xc4] sm:$0xff]
    %v453 = vld [vmem:[%s5 + $0xcc] sm:$0xff]
    %v454 = vld [vmem:[%s5 + $0xd4] sm:$0xff]
    %v455 = vld [vmem:[%s5 + $0xdc] sm:$0xf]
    %v456 = vld [vmem:[%s5 + $0xe0] sm:$0xff]
    %v457 = vld [vmem:[%s5 + $0xe8] sm:$0xff]
    %v458 = vld [vmem:[%s5 + $0xf0] sm:$0xff]
    %v459 = vld [vmem:[%s5 + $0xf8] sm:$0xf]
    %v460 = vld [vmem:[%s5 + $0xfc] sm:$0xff]
    %v461 = vld [vmem:[%s5 + $0x104] sm:$0xff]
    %v462 = vld [vmem:[%s5 + $0x10c] sm:$0xff]
    %v463 = vld [vmem:[%s5 + $0x114] sm:$0xf]
    %v464 = vld [vmem:[%s5 + $0x118] sm:$0xff]
    %v465 = vld [vmem:[%s5 + $0x120] sm:$0xff]
    %v466 = vld [vmem:[%s5 + $0x128] sm:$0xff]
    %v467 = vld [vmem:[%s5 + $0x130] sm:$0xf]
    %v468 = vld [vmem:[%s5 + $0x134] sm:$0xff]
    %v469 = vld [vmem:[%s5 + $0x13c] sm:$0xff]
    %v470 = vld [vmem:[%s5 + $0x144] sm:$0xff]
    %v471 = vld [vmem:[%s5 + $0x14c] sm:$0xf]
    %v472 = vld [vmem:[%s5 + $0x150] sm:$0xff]
    %v473 = vld [vmem:[%s5 + $0x158] sm:$0xff]
    %v474 = vld [vmem:[%s5 + $0x160] sm:$0xff]
    %v475 = vld [vmem:[%s5 + $0x168] sm:$0xf]
    %v476 = vld [vmem:[%s5 + $0x16c] sm:$0xff]
    %v477 = vld [vmem:[%s5 + $0x174] sm:$0xff]
    %v478 = vld [vmem:[%s5 + $0x17c] sm:$0xff]
    %v479 = vld [vmem:[%s5 + $0x184] sm:$0xf]
    %v480 = vld [vmem:[%s5 + $0x188] sm:$0xff]
    %v481 = vld [vmem:[%s5 + $0x190] sm:$0xff]
    %v482 = vld [vmem:[%s5 + $0x198] sm:$0xff]
    %v483 = vld [vmem:[%s5 + $0x1a0] sm:$0xf]
    %v484 = vld [vmem:[%s5 + $0x1a4] sm:$0xff]
    %v485 = vld [vmem:[%s5 + $0x1ac] sm:$0xff]
    %v486 = vld [vmem:[%s5 + $0x1b4] sm:$0xff]
    %v487 = vld [vmem:[%s5 + $0x1bc] sm:$0xf]
    %v488 = vld [vmem:[%s5 + $0x1c0] sm:$0xff]
    %v489 = vld [vmem:[%s5 + $0x1c8] sm:$0xff]
    %v490 = vld [vmem:[%s5 + $0x1d0] sm:$0xff]
    %v491 = vld [vmem:[%s5 + $0x1d8] sm:$0xf]
    %v492 = vld [vmem:[%s5 + $0x1dc] sm:$0xff]
    %v493 = vld [vmem:[%s5 + $0x1e4] sm:$0xff]
    %v494 = vld [vmem:[%s5 + $0x1ec] sm:$0xff]
    %v495 = vld [vmem:[%s5 + $0x1f4] sm:$0xf]
    %v496 = vld [vmem:[%s5 + $0x1f8] sm:$0xff]
    %v497 = vld [vmem:[%s5 + $0x200] sm:$0xff]
    %v498 = vld [vmem:[%s5 + $0x208] sm:$0xff]
    %v499 = vld [vmem:[%s5 + $0x210] sm:$0xf]
    %v500 = vld [vmem:[%s5 + $0x214] sm:$0xff]
    %v501 = vld [vmem:[%s5 + $0x21c] sm:$0xff]
    %v502 = vld [vmem:[%s5 + $0x224] sm:$0xff]
    %v503 = vld [vmem:[%s5 + $0x22c] sm:$0xf]
    %v504 = vld [vmem:[%s5 + $0x230] sm:$0xff]
    %v505 = vld [vmem:[%s5 + $0x238] sm:$0xff]
    %v506 = vld [vmem:[%s5 + $0x240] sm:$0xff]
    %v507 = vld [vmem:[%s5 + $0x248] sm:$0xf]
    %v508 = vld [vmem:[%s5 + $0x24c] sm:$0xff]
    %v509 = vld [vmem:[%s5 + $0x254] sm:$0xff]
    %v510 = vld [vmem:[%s5 + $0x25c] sm:$0xff]
    %v511 = vld [vmem:[%s5 + $0x264] sm:$0xf]
    %v512 = vld [vmem:[%s5 + $0x268] sm:$0xff]
    %v513 = vld [vmem:[%s5 + $0x270] sm:$0xff]
    %v514 = vld [vmem:[%s5 + $0x278] sm:$0xff]
    %v515 = vld [vmem:[%s5 + $0x280] sm:$0xf]
    %v516 = vld [vmem:[%s5 + $0x284] sm:$0xff]
    %v517 = vld [vmem:[%s5 + $0x28c] sm:$0xff]
    %v518 = vld [vmem:[%s5 + $0x294] sm:$0xff]
    %v519 = vld [vmem:[%s5 + $0x29c] sm:$0xf]
    %v520 = vld [vmem:[%s5 + $0x2a0] sm:$0xff]
    %v521 = vld [vmem:[%s5 + $0x2a8] sm:$0xff]
    %v522 = vld [vmem:[%s5 + $0x2b0] sm:$0xff]
    %v523 = vld [vmem:[%s5 + $0x2b8] sm:$0xf]
    %v524 = vld [vmem:[%s5 + $0x2bc] sm:$0xff]
    %v525 = vld [vmem:[%s5 + $0x2c4] sm:$0xff]
    %v526 = vld [vmem:[%s5 + $0x2cc] sm:$0xff]
    %v527 = vld [vmem:[%s5 + $0x2d4] sm:$0xf]
    %v528 = vld [vmem:[%s5 + $0x2d8] sm:$0xff]
    %v529 = vld [vmem:[%s5 + $0x2e0] sm:$0xff]
    %v530 = vld [vmem:[%s5 + $0x2e8] sm:$0xff]
    %v531 = vld [vmem:[%s5 + $0x2f0] sm:$0xf]
    %v532 = vld [vmem:[%s5 + $0x2f4] sm:$0xff]
    %v533 = vld [vmem:[%s5 + $0x2fc] sm:$0xff]
    %v534 = vld [vmem:[%s5 + $0x304] sm:$0xff]
    %v535 = vld [vmem:[%s5 + $0x30c] sm:$0xf]
    %v536 = vld [vmem:[%s5 + $0x310] sm:$0xff]
    %v537 = vld [vmem:[%s5 + $0x318] sm:$0xff]
    %v538 = vld [vmem:[%s5 + $0x320] sm:$0xff]
    %v539 = vld [vmem:[%s5 + $0x328] sm:$0xf]
    %v540 = vld [vmem:[%s5 + $0x32c] sm:$0xff]
    %v541 = vld [vmem:[%s5 + $0x334] sm:$0xff]
    %v542 = vld [vmem:[%s5 + $0x33c] sm:$0xff]
    %v543 = vld [vmem:[%s5 + $0x344] sm:$0xf]
    %v544 = vld [vmem:[%s5 + $0x348] sm:$0xff]
    %v545 = vld [vmem:[%s5 + $0x350] sm:$0xff]
    %v546 = vld [vmem:[%s5 + $0x358] sm:$0xff]
    %v547 = vld [vmem:[%s5 + $0x360] sm:$0xf]
    %v548 = vld [vmem:[%s5 + $0x364] sm:$0xff]
    %v549 = vld [vmem:[%s5 + $0x36c] sm:$0xff]
    %v550 = vld [vmem:[%s5 + $0x374] sm:$0xff]
    %v551 = vld [vmem:[%s5 + $0x37c] sm:$0xf]
    %v552 = vld [vmem:[%s6] sm:$0x7f]
    %v554 = vlaneseq
    %v555 = vshrl.u32 %v554, 7
    %v556 = vsub.s32 0, %v555
    %v557 = vrot.slane %v552, %v556
    %v558 = vlaneseq
    %v559 = vshrl.u32 %v558, 7
    %v560 = vsub.s32 1, %v559
    %v561 = vrot.slane %v552, %v560
    %v562 = vlaneseq
    %v563 = vshrl.u32 %v562, 7
    %v564 = vsub.s32 2, %v563
    %v565 = vrot.slane %v552, %v564
    %v566 = vlaneseq
    %v567 = vshrl.u32 %v566, 7
    %v568 = vsub.s32 3, %v567
    %v569 = vrot.slane %v552, %v568
    %v570 = vlaneseq
    %v571 = vshrl.u32 %v570, 7
    %v572 = vsub.s32 4, %v571
    %v573 = vrot.slane %v552, %v572
    %v574 = vlaneseq
    %v575 = vshrl.u32 %v574, 7
    %v576 = vsub.s32 5, %v575
    %v577 = vrot.slane %v552, %v576
    %v578 = vlaneseq
    %v579 = vshrl.u32 %v578, 7
    %v580 = vsub.s32 6, %v579
    %v581 = vrot.slane %v552, %v580
    %v717 = vunpack.c.l.b16 %v424
    %v718 = vunpack.c.h.b16 %v424
    %v719 = vunpack.c.l.b16 %v425
    %v720 = vunpack.c.h.b16 %v425
    %v721 = vunpack.c.l.b16 %v426
    %v722 = vunpack.c.h.b16 %v426
    %v723 = vunpack.c.l.b16 %v427
    %v724 = vunpack.c.l.b16 %v428
    %v725 = vunpack.c.h.b16 %v428
    %v726 = vunpack.c.l.b16 %v429
    %v727 = vunpack.c.h.b16 %v429
    %v728 = vunpack.c.l.b16 %v430
    %v729 = vunpack.c.h.b16 %v430
    %v730 = vunpack.c.l.b16 %v431
    %v731 = vunpack.c.l.b16 %v432
    %v732 = vunpack.c.h.b16 %v432
    %v733 = vunpack.c.l.b16 %v433
    %v734 = vunpack.c.h.b16 %v433
    %v735 = vunpack.c.l.b16 %v434
    %v736 = vunpack.c.h.b16 %v434
    %v737 = vunpack.c.l.b16 %v435
    %v738 = vunpack.c.l.b16 %v436
    %v739 = vunpack.c.h.b16 %v436
    %v740 = vunpack.c.l.b16 %v437
    %v741 = vunpack.c.h.b16 %v437
    %v742 = vunpack.c.l.b16 %v438
    %v743 = vunpack.c.h.b16 %v438
    %v744 = vunpack.c.l.b16 %v439
    %v745 = vunpack.c.l.b16 %v440
    %v746 = vunpack.c.h.b16 %v440
    %v747 = vunpack.c.l.b16 %v441
    %v748 = vunpack.c.h.b16 %v441
    %v749 = vunpack.c.l.b16 %v442
    %v750 = vunpack.c.h.b16 %v442
    %v751 = vunpack.c.l.b16 %v443
    %v752 = vunpack.c.l.b16 %v444
    %v753 = vunpack.c.h.b16 %v444
    %v754 = vunpack.c.l.b16 %v445
    %v755 = vunpack.c.h.b16 %v445
    %v756 = vunpack.c.l.b16 %v446
    %v757 = vunpack.c.h.b16 %v446
    %v758 = vunpack.c.l.b16 %v447
    %v759 = vunpack.c.l.b16 %v448
    %v760 = vunpack.c.h.b16 %v448
    %v761 = vunpack.c.l.b16 %v449
    %v762 = vunpack.c.h.b16 %v449
    %v763 = vunpack.c.l.b16 %v450
    %v764 = vunpack.c.h.b16 %v450
    %v765 = vunpack.c.l.b16 %v451
    %v766 = vunpack.c.l.b16 %v452
    %v767 = vunpack.c.h.b16 %v452
    %v768 = vunpack.c.l.b16 %v453
    %v769 = vunpack.c.h.b16 %v453
    %v770 = vunpack.c.l.b16 %v454
    %v771 = vunpack.c.h.b16 %v454
    %v772 = vunpack.c.l.b16 %v455
    %v773 = vunpack.c.l.b16 %v456
    %v774 = vunpack.c.h.b16 %v456
    %v775 = vunpack.c.l.b16 %v457
    %v776 = vunpack.c.h.b16 %v457
    %v777 = vunpack.c.l.b16 %v458
    %v778 = vunpack.c.h.b16 %v458
    %v779 = vunpack.c.l.b16 %v459
    %v780 = vunpack.c.l.b16 %v460
    %v781 = vunpack.c.h.b16 %v460
    %v782 = vunpack.c.l.b16 %v461
    %v783 = vunpack.c.h.b16 %v461
    %v784 = vunpack.c.l.b16 %v462
    %v785 = vunpack.c.h.b16 %v462
    %v786 = vunpack.c.l.b16 %v463
    %v787 = vunpack.c.l.b16 %v464
    %v788 = vunpack.c.h.b16 %v464
    %v789 = vunpack.c.l.b16 %v465
    %v790 = vunpack.c.h.b16 %v465
    %v791 = vunpack.c.l.b16 %v466
    %v792 = vunpack.c.h.b16 %v466
    %v793 = vunpack.c.l.b16 %v467
    %v794 = vunpack.c.l.b16 %v468
    %v795 = vunpack.c.h.b16 %v468
    %v796 = vunpack.c.l.b16 %v469
    %v797 = vunpack.c.h.b16 %v469
    %v798 = vunpack.c.l.b16 %v470
    %v799 = vunpack.c.h.b16 %v470
    %v800 = vunpack.c.l.b16 %v471
    %v801 = vunpack.c.l.b16 %v472
    %v802 = vunpack.c.h.b16 %v472
    %v803 = vunpack.c.l.b16 %v473
    %v804 = vunpack.c.h.b16 %v473
    %v805 = vunpack.c.l.b16 %v474
    %v806 = vunpack.c.h.b16 %v474
    %v807 = vunpack.c.l.b16 %v475
    %v808 = vunpack.c.l.b16 %v476
    %v809 = vunpack.c.h.b16 %v476
    %v810 = vunpack.c.l.b16 %v477
    %v811 = vunpack.c.h.b16 %v477
    %v812 = vunpack.c.l.b16 %v478
    %v813 = vunpack.c.h.b16 %v478
    %v814 = vunpack.c.l.b16 %v479
    %v815 = vunpack.c.l.b16 %v480
    %v816 = vunpack.c.h.b16 %v480
    %v817 = vunpack.c.l.b16 %v481
    %v818 = vunpack.c.h.b16 %v481
    %v819 = vunpack.c.l.b16 %v482
    %v820 = vunpack.c.h.b16 %v482
    %v821 = vunpack.c.l.b16 %v483
    %v822 = vunpack.c.l.b16 %v484
    %v823 = vunpack.c.h.b16 %v484
    %v824 = vunpack.c.l.b16 %v485
    %v825 = vunpack.c.h.b16 %v485
    %v826 = vunpack.c.l.b16 %v486
    %v827 = vunpack.c.h.b16 %v486
    %v828 = vunpack.c.l.b16 %v487
    %v829 = vunpack.c.l.b16 %v488
    %v830 = vunpack.c.h.b16 %v488
    %v831 = vunpack.c.l.b16 %v489
    %v832 = vunpack.c.h.b16 %v489
    %v833 = vunpack.c.l.b16 %v490
    %v834 = vunpack.c.h.b16 %v490
    %v835 = vunpack.c.l.b16 %v491
    %v836 = vunpack.c.l.b16 %v492
    %v837 = vunpack.c.h.b16 %v492
    %v838 = vunpack.c.l.b16 %v493
    %v839 = vunpack.c.h.b16 %v493
    %v840 = vunpack.c.l.b16 %v494
    %v841 = vunpack.c.h.b16 %v494
    %v842 = vunpack.c.l.b16 %v495
    %v843 = vunpack.c.l.b16 %v496
    %v844 = vunpack.c.h.b16 %v496
    %v845 = vunpack.c.l.b16 %v497
    %v846 = vunpack.c.h.b16 %v497
    %v847 = vunpack.c.l.b16 %v498
    %v848 = vunpack.c.h.b16 %v498
    %v849 = vunpack.c.l.b16 %v499
    %v850 = vunpack.c.l.b16 %v500
    %v851 = vunpack.c.h.b16 %v500
    %v852 = vunpack.c.l.b16 %v501
    %v853 = vunpack.c.h.b16 %v501
    %v854 = vunpack.c.l.b16 %v502
    %v855 = vunpack.c.h.b16 %v502
    %v856 = vunpack.c.l.b16 %v503
    %v857 = vunpack.c.l.b16 %v504
    %v858 = vunpack.c.h.b16 %v504
    %v859 = vunpack.c.l.b16 %v505
    %v860 = vunpack.c.h.b16 %v505
    %v861 = vunpack.c.l.b16 %v506
    %v862 = vunpack.c.h.b16 %v506
    %v863 = vunpack.c.l.b16 %v507
    %v864 = vunpack.c.l.b16 %v508
    %v865 = vunpack.c.h.b16 %v508
    %v866 = vunpack.c.l.b16 %v509
    %v867 = vunpack.c.h.b16 %v509
    %v868 = vunpack.c.l.b16 %v510
    %v869 = vunpack.c.h.b16 %v510
    %v870 = vunpack.c.l.b16 %v511
    %v871 = vunpack.c.l.b16 %v512
    %v872 = vunpack.c.h.b16 %v512
    %v873 = vunpack.c.l.b16 %v513
    %v874 = vunpack.c.h.b16 %v513
    %v875 = vunpack.c.l.b16 %v514
    %v876 = vunpack.c.h.b16 %v514
    %v877 = vunpack.c.l.b16 %v515
    %v878 = vunpack.c.l.b16 %v516
    %v879 = vunpack.c.h.b16 %v516
    %v880 = vunpack.c.l.b16 %v517
    %v881 = vunpack.c.h.b16 %v517
    %v882 = vunpack.c.l.b16 %v518
    %v883 = vunpack.c.h.b16 %v518
    %v884 = vunpack.c.l.b16 %v519
    %v885 = vunpack.c.l.b16 %v520
    %v886 = vunpack.c.h.b16 %v520
    %v887 = vunpack.c.l.b16 %v521
    %v888 = vunpack.c.h.b16 %v521
    %v889 = vunpack.c.l.b16 %v522
    %v890 = vunpack.c.h.b16 %v522
    %v891 = vunpack.c.l.b16 %v523
    %v892 = vunpack.c.l.b16 %v524
    %v893 = vunpack.c.h.b16 %v524
    %v894 = vunpack.c.l.b16 %v525
    %v895 = vunpack.c.h.b16 %v525
    %v896 = vunpack.c.l.b16 %v526
    %v897 = vunpack.c.h.b16 %v526
    %v898 = vunpack.c.l.b16 %v527
    %v899 = vunpack.c.l.b16 %v528
    %v900 = vunpack.c.h.b16 %v528
    %v901 = vunpack.c.l.b16 %v529
    %v902 = vunpack.c.h.b16 %v529
    %v903 = vunpack.c.l.b16 %v530
    %v904 = vunpack.c.h.b16 %v530
    %v905 = vunpack.c.l.b16 %v531
    %v906 = vunpack.c.l.b16 %v532
    %v907 = vunpack.c.h.b16 %v532
    %v908 = vunpack.c.l.b16 %v533
    %v909 = vunpack.c.h.b16 %v533
    %v910 = vunpack.c.l.b16 %v534
    %v911 = vunpack.c.h.b16 %v534
    %v912 = vunpack.c.l.b16 %v535
    %v913 = vunpack.c.l.b16 %v536
    %v914 = vunpack.c.h.b16 %v536
    %v915 = vunpack.c.l.b16 %v537
    %v916 = vunpack.c.h.b16 %v537
    %v917 = vunpack.c.l.b16 %v538
    %v918 = vunpack.c.h.b16 %v538
    %v919 = vunpack.c.l.b16 %v539
    %v920 = vunpack.c.l.b16 %v540
    %v921 = vunpack.c.h.b16 %v540
    %v922 = vunpack.c.l.b16 %v541
    %v923 = vunpack.c.h.b16 %v541
    %v924 = vunpack.c.l.b16 %v542
    %v925 = vunpack.c.h.b16 %v542
    %v926 = vunpack.c.l.b16 %v543
    %v927 = vunpack.c.l.b16 %v544
    %v928 = vunpack.c.h.b16 %v544
    %v929 = vunpack.c.l.b16 %v545
    %v930 = vunpack.c.h.b16 %v545
    %v931 = vunpack.c.l.b16 %v546
    %v932 = vunpack.c.h.b16 %v546
    %v933 = vunpack.c.l.b16 %v547
    %v934 = vunpack.c.l.b16 %v548
    %v935 = vunpack.c.h.b16 %v548
    %v936 = vunpack.c.l.b16 %v549
    %v937 = vunpack.c.h.b16 %v549
    %v938 = vunpack.c.l.b16 %v550
    %v939 = vunpack.c.h.b16 %v550
    %v940 = vunpack.c.l.b16 %v551
    %v941 = vpack.c.b16 %v724, %v717
    %v942 = vpack.c.b16 %v725, %v718
    %v943 = vpack.c.b16 %v726, %v719
    %v944 = vpack.c.b16 %v727, %v720
    %v945 = vpack.c.b16 %v728, %v721
    %v946 = vpack.c.b16 %v729, %v722
    %v947 = vpack.c.b16 %v730, %v723
    %v948 = vpack.c.b16 %v738, %v731
    %v949 = vpack.c.b16 %v739, %v732
    %v950 = vpack.c.b16 %v740, %v733
    %v951 = vpack.c.b16 %v741, %v734
    %v952 = vpack.c.b16 %v742, %v735
    %v953 = vpack.c.b16 %v743, %v736
    %v954 = vpack.c.b16 %v744, %v737
    %v955 = vpack.c.b16 %v752, %v745
    %v956 = vpack.c.b16 %v753, %v746
    %v957 = vpack.c.b16 %v754, %v747
    %v958 = vpack.c.b16 %v755, %v748
    %v959 = vpack.c.b16 %v756, %v749
    %v960 = vpack.c.b16 %v757, %v750
    %v961 = vpack.c.b16 %v758, %v751
    %v962 = vpack.c.b16 %v766, %v759
    %v963 = vpack.c.b16 %v767, %v760
    %v964 = vpack.c.b16 %v768, %v761
    %v965 = vpack.c.b16 %v769, %v762
    %v966 = vpack.c.b16 %v770, %v763
    %v967 = vpack.c.b16 %v771, %v764
    %v968 = vpack.c.b16 %v772, %v765
    %v969 = vpack.c.b16 %v780, %v773
    %v970 = vpack.c.b16 %v781, %v774
    %v971 = vpack.c.b16 %v782, %v775
    %v972 = vpack.c.b16 %v783, %v776
    %v973 = vpack.c.b16 %v784, %v777
    %v974 = vpack.c.b16 %v785, %v778
    %v975 = vpack.c.b16 %v786, %v779
    %v976 = vpack.c.b16 %v794, %v787
    %v977 = vpack.c.b16 %v795, %v788
    %v978 = vpack.c.b16 %v796, %v789
    %v979 = vpack.c.b16 %v797, %v790
    %v980 = vpack.c.b16 %v798, %v791
    %v981 = vpack.c.b16 %v799, %v792
    %v982 = vpack.c.b16 %v800, %v793
    %v983 = vpack.c.b16 %v808, %v801
    %v984 = vpack.c.b16 %v809, %v802
    %v985 = vpack.c.b16 %v810, %v803
    %v986 = vpack.c.b16 %v811, %v804
    %v987 = vpack.c.b16 %v812, %v805
    %v988 = vpack.c.b16 %v813, %v806
    %v989 = vpack.c.b16 %v814, %v807
    %v990 = vpack.c.b16 %v822, %v815
    %v991 = vpack.c.b16 %v823, %v816
    %v992 = vpack.c.b16 %v824, %v817
    %v993 = vpack.c.b16 %v825, %v818
    %v994 = vpack.c.b16 %v826, %v819
    %v995 = vpack.c.b16 %v827, %v820
    %v996 = vpack.c.b16 %v828, %v821
    %v997 = vpack.c.b16 %v836, %v829
    %v998 = vpack.c.b16 %v837, %v830
    %v999 = vpack.c.b16 %v838, %v831
    %v1000 = vpack.c.b16 %v839, %v832
    %v1001 = vpack.c.b16 %v840, %v833
    %v1002 = vpack.c.b16 %v841, %v834
    %v1003 = vpack.c.b16 %v842, %v835
    %v1004 = vpack.c.b16 %v850, %v843
    %v1005 = vpack.c.b16 %v851, %v844
    %v1006 = vpack.c.b16 %v852, %v845
    %v1007 = vpack.c.b16 %v853, %v846
    %v1008 = vpack.c.b16 %v854, %v847
    %v1009 = vpack.c.b16 %v855, %v848
    %v1010 = vpack.c.b16 %v856, %v849
    %v1011 = vpack.c.b16 %v864, %v857
    %v1012 = vpack.c.b16 %v865, %v858
    %v1013 = vpack.c.b16 %v866, %v859
    %v1014 = vpack.c.b16 %v867, %v860
    %v1015 = vpack.c.b16 %v868, %v861
    %v1016 = vpack.c.b16 %v869, %v862
    %v1017 = vpack.c.b16 %v870, %v863
    %v1018 = vpack.c.b16 %v878, %v871
    %v1019 = vpack.c.b16 %v879, %v872
    %v1020 = vpack.c.b16 %v880, %v873
    %v1021 = vpack.c.b16 %v881, %v874
    %v1022 = vpack.c.b16 %v882, %v875
    %v1023 = vpack.c.b16 %v883, %v876
    %v1024 = vpack.c.b16 %v884, %v877
    %v1025 = vpack.c.b16 %v892, %v885
    %v1026 = vpack.c.b16 %v893, %v886
    %v1027 = vpack.c.b16 %v894, %v887
    %v1028 = vpack.c.b16 %v895, %v888
    %v1029 = vpack.c.b16 %v896, %v889
    %v1030 = vpack.c.b16 %v897, %v890
    %v1031 = vpack.c.b16 %v898, %v891
    %v1032 = vpack.c.b16 %v906, %v899
    %v1033 = vpack.c.b16 %v907, %v900
    %v1034 = vpack.c.b16 %v908, %v901
    %v1035 = vpack.c.b16 %v909, %v902
    %v1036 = vpack.c.b16 %v910, %v903
    %v1037 = vpack.c.b16 %v911, %v904
    %v1038 = vpack.c.b16 %v912, %v905
    %v1039 = vpack.c.b16 %v920, %v913
    %v1040 = vpack.c.b16 %v921, %v914
    %v1041 = vpack.c.b16 %v922, %v915
    %v1042 = vpack.c.b16 %v923, %v916
    %v1043 = vpack.c.b16 %v924, %v917
    %v1044 = vpack.c.b16 %v925, %v918
    %v1045 = vpack.c.b16 %v926, %v919
    %v1046 = vpack.c.b16 %v934, %v927
    %v1047 = vpack.c.b16 %v935, %v928
    %v1048 = vpack.c.b16 %v936, %v929
    %v1049 = vpack.c.b16 %v937, %v930
    %v1050 = vpack.c.b16 %v938, %v931
    %v1051 = vpack.c.b16 %v939, %v932
    %v1052 = vpack.c.b16 %v940, %v933
    %1165 = vmatprep.subr.bf16.mxu0 %v991
    %1166 = vmatpush1.bf16.msra.mxu0 %v990
    %1167 = vmatprep.subr.bf16.mxu0 %v984
    %1168 = vmatpush1.bf16.msra.mxu0 %v983
    %1169 = vmatprep.subr.bf16.mxu0 %v977
    %1170 = vmatpush1.bf16.msra.mxu0 %v976
    %1171 = vmatprep.subr.bf16.mxu0 %v970
    %1172 = vmatpush1.bf16.msra.mxu0 %v969
    %1173 = vmatprep.subr.bf16.mxu0 %v963
    %1174 = vmatpush1.bf16.msra.mxu0 %v962
    %1175 = vmatprep.subr.bf16.mxu0 %v956
    %1176 = vmatpush1.bf16.msra.mxu0 %v955
    %1177 = vmatprep.subr.bf16.mxu0 %v949
    %1178 = vmatpush1.bf16.msra.mxu0 %v948
    %1179 = vmatprep.subr.bf16.mxu0 %v942
    %1180 = vmatpush1.bf16.msra.mxu0 %v941
    %1181 = vmatprep.subr.bf16.mxu0 %v1047
    %1182 = vmatpush2.bf16.msra.mxu0 %v1046
    %1183 = vmatprep.subr.bf16.mxu0 %v1040
    %1184 = vmatpush2.bf16.msra.mxu0 %v1039
    %1185 = vmatprep.subr.bf16.mxu0 %v1033
    %1186 = vmatpush2.bf16.msra.mxu0 %v1032
    %1187 = vmatprep.subr.bf16.mxu0 %v1026
    %1188 = vmatpush2.bf16.msra.mxu0 %v1025
    %1189 = vmatprep.subr.bf16.mxu0 %v1019
    %1190 = vmatpush2.bf16.msra.mxu0 %v1018
    %1191 = vmatprep.subr.bf16.mxu0 %v1012
    %1192 = vmatpush2.bf16.msra.mxu0 %v1011
    %1193 = vmatprep.subr.bf16.mxu0 %v1005
    %1194 = vmatpush2.bf16.msra.mxu0 %v1004
    %1195 = vmatprep.subr.bf16.mxu0 %v998
    %1196 = vmatpush2.bf16.msra.mxu0 %v997
    %1197 = vmatprep.mubr.bf16.mxu0 %v423
    %1198 = vmatmul.mubr.bf16.gmra.mxu0 %v422
    %v1199 = vpop.f32.mrf.mxu0
    %v1200 = vadd.f32 %v557, %v1199
    %v1201 = vpop.f32.mrf.mxu0
    %v1202 = vadd.f32 %v561, %v1201
    %v1203 = vpop.f32.mrf.mxu0
    %v1204 = vpop.f32.mrf.mxu0
    %1205 = vdwg.mxu0
    %1206 = vmatprep.subr.bf16.mxu0 %v993
    %1207 = vmatpush1.bf16.msra.mxu0 %v992
    %1208 = vmatprep.subr.bf16.mxu0 %v986
    %1209 = vmatpush1.bf16.msra.mxu0 %v985
    %1210 = vmatprep.subr.bf16.mxu0 %v979
    %1211 = vmatpush1.bf16.msra.mxu0 %v978
    %1212 = vmatprep.subr.bf16.mxu0 %v972
    %1213 = vmatpush1.bf16.msra.mxu0 %v971
    %1214 = vmatprep.subr.bf16.mxu0 %v965
    %1215 = vmatpush1.bf16.msra.mxu0 %v964
    %1216 = vmatprep.subr.bf16.mxu0 %v958
    %1217 = vmatpush1.bf16.msra.mxu0 %v957
    %1218 = vmatprep.subr.bf16.mxu0 %v951
    %1219 = vmatpush1.bf16.msra.mxu0 %v950
    %1220 = vmatprep.subr.bf16.mxu0 %v944
    %1221 = vmatpush1.bf16.msra.mxu0 %v943
    %1222 = vmatprep.subr.bf16.mxu0 %v1049
    %1223 = vmatpush2.bf16.msra.mxu0 %v1048
    %1224 = vmatprep.subr.bf16.mxu0 %v1042
    %1225 = vmatpush2.bf16.msra.mxu0 %v1041
    %1226 = vmatprep.subr.bf16.mxu0 %v1035
    %1227 = vmatpush2.bf16.msra.mxu0 %v1034
    %1228 = vmatprep.subr.bf16.mxu0 %v1028
    %1229 = vmatpush2.bf16.msra.mxu0 %v1027
    %1230 = vmatprep.subr.bf16.mxu0 %v1021
    %1231 = vmatpush2.bf16.msra.mxu0 %v1020
    %1232 = vmatprep.subr.bf16.mxu0 %v1014
    %1233 = vmatpush2.bf16.msra.mxu0 %v1013
    %1234 = vmatprep.subr.bf16.mxu0 %v1007
    %1235 = vmatpush2.bf16.msra.mxu0 %v1006
    %1236 = vmatprep.subr.bf16.mxu0 %v1000
    %1237 = vmatpush2.bf16.msra.mxu0 %v999
    %1238 = vmatprep.mubr.bf16.mxu0 %v423
    %1239 = vmatmul.mubr.bf16.gmra.mxu0 %v422
    %v1240 = vpop.f32.mrf.mxu0
    %v1241 = vadd.f32 %v565, %v1240
    %v1242 = vpop.f32.mrf.mxu0
    %v1243 = vadd.f32 %v569, %v1242
    %v1244 = vpop.f32.mrf.mxu0
    %v1245 = vpop.f32.mrf.mxu0
    %1246 = vdwg.mxu0
    %1247 = vmatprep.subr.bf16.mxu0 %v995
    %1248 = vmatpush1.bf16.msra.mxu0 %v994
    %1249 = vmatprep.subr.bf16.mxu0 %v988
    %1250 = vmatpush1.bf16.msra.mxu0 %v987
    %1251 = vmatprep.subr.bf16.mxu0 %v981
    %1252 = vmatpush1.bf16.msra.mxu0 %v980
    %1253 = vmatprep.subr.bf16.mxu0 %v974
    %1254 = vmatpush1.bf16.msra.mxu0 %v973
    %1255 = vmatprep.subr.bf16.mxu0 %v967
    %1256 = vmatpush1.bf16.msra.mxu0 %v966
    %1257 = vmatprep.subr.bf16.mxu0 %v960
    %1258 = vmatpush1.bf16.msra.mxu0 %v959
    %1259 = vmatprep.subr.bf16.mxu0 %v953
    %1260 = vmatpush1.bf16.msra.mxu0 %v952
    %1261 = vmatprep.subr.bf16.mxu0 %v946
    %1262 = vmatpush1.bf16.msra.mxu0 %v945
    %1263 = vmatprep.subr.bf16.mxu0 %v1051
    %1264 = vmatpush2.bf16.msra.mxu0 %v1050
    %1265 = vmatprep.subr.bf16.mxu0 %v1044
    %1266 = vmatpush2.bf16.msra.mxu0 %v1043
    %1267 = vmatprep.subr.bf16.mxu0 %v1037
    %1268 = vmatpush2.bf16.msra.mxu0 %v1036
    %1269 = vmatprep.subr.bf16.mxu0 %v1030
    %1270 = vmatpush2.bf16.msra.mxu0 %v1029
    %1271 = vmatprep.subr.bf16.mxu0 %v1023
    %1272 = vmatpush2.bf16.msra.mxu0 %v1022
    %1273 = vmatprep.subr.bf16.mxu0 %v1016
    %1274 = vmatpush2.bf16.msra.mxu0 %v1015
    %1275 = vmatprep.subr.bf16.mxu0 %v1009
    %1276 = vmatpush2.bf16.msra.mxu0 %v1008
    %1277 = vmatprep.subr.bf16.mxu0 %v1002
    %1278 = vmatpush2.bf16.msra.mxu0 %v1001
    %1279 = vmatprep.mubr.bf16.mxu0 %v423
    %1280 = vmatmul.mubr.bf16.gmra.mxu0 %v422
    %v1281 = vpop.f32.mrf.mxu0
    %v1282 = vadd.f32 %v573, %v1281
    %v1283 = vpop.f32.mrf.mxu0
    %v1284 = vadd.f32 %v577, %v1283
    %v1285 = vpop.f32.mrf.mxu0
    %v1286 = vpop.f32.mrf.mxu0
    %1287 = vdwg.mxu0
    %1288 = vmatprep.subr.bf16.mxu0 0
    %1289 = vmatpush1.bf16.msra.mxu0 %v996
    %1290 = vmatprep.subr.bf16.mxu0 0
    %1291 = vmatpush1.bf16.msra.mxu0 %v989
    %1292 = vmatprep.subr.bf16.mxu0 0
    %1293 = vmatpush1.bf16.msra.mxu0 %v982
    %1294 = vmatprep.subr.bf16.mxu0 0
    %1295 = vmatpush1.bf16.msra.mxu0 %v975
    %1296 = vmatprep.subr.bf16.mxu0 0
    %1297 = vmatpush1.bf16.msra.mxu0 %v968
    %1298 = vmatprep.subr.bf16.mxu0 0
    %1299 = vmatpush1.bf16.msra.mxu0 %v961
    %1300 = vmatprep.subr.bf16.mxu0 0
    %1301 = vmatpush1.bf16.msra.mxu0 %v954
    %1302 = vmatprep.subr.bf16.mxu0 0
    %1303 = vmatpush1.bf16.msra.mxu0 %v947
    %1304 = vmatprep.subr.bf16.mxu0 0
    %1305 = vmatpush2.bf16.msra.mxu0 %v1052
    %1306 = vmatprep.subr.bf16.mxu0 0
    %1307 = vmatpush2.bf16.msra.mxu0 %v1045
    %1308 = vmatprep.subr.bf16.mxu0 0
    %1309 = vmatpush2.bf16.msra.mxu0 %v1038
    %1310 = vmatprep.subr.bf16.mxu0 0
    %1311 = vmatpush2.bf16.msra.mxu0 %v1031
    %1312 = vmatprep.subr.bf16.mxu0 0
    %1313 = vmatpush2.bf16.msra.mxu0 %v1024
    %1314 = vmatprep.subr.bf16.mxu0 0
    %1315 = vmatpush2.bf16.msra.mxu0 %v1017
    %1316 = vmatprep.subr.bf16.mxu0 0
    %1317 = vmatpush2.bf16.msra.mxu0 %v1010
    %1318 = vmatprep.subr.bf16.mxu0 0
    %1319 = vmatpush2.bf16.msra.mxu0 %v1003
    %1320 = vmatprep.mubr.bf16.mxu0 %v423
    %1321 = vmatmul.mubr.bf16.gmra.mxu0 %v422
    %v1322 = vpop.f32.mrf.mxu0
    %v1323 = vadd.f32 %v581, %v1322
    %v1324 = vpop.f32.mrf.mxu0
    %v1325 = vpop.f32.mrf.mxu0
    %v1326 = vpop.f32.mrf.mxu0
    %1327 = vdwg.mxu0
    %v1328 = vtanh.pop %v1200
    %v1329 = vtanh.pop %v1202
    %v1330 = vtanh.pop %v1241
    %v1331 = vtanh.pop %v1243
    %v1332 = vtanh.pop %v1282
    %v1333 = vtanh.pop %v1284
    %v1334 = vtanh.pop %v1323
    %1335 = vst [vmem:[#allocation2] sm:$0xff] %v1328
    %1336 = vst [vmem:[#allocation2 + $0x8] sm:$0xff] %v1329
    %1337 = vst [vmem:[#allocation2 + $0x10] sm:$0xff] %v1330
    %1338 = vst [vmem:[#allocation2 + $0x18] sm:$0xff] %v1331
    %1339 = vst [vmem:[#allocation2 + $0x20] sm:$0xff] %v1332
    %1340 = vst [vmem:[#allocation2 + $0x28] sm:$0xff] %v1333
    %vm1341 = vcmask 130048
    %1342 = vst.msk [vmem:[#allocation2 + $0x30] sm:$0xff] %vm1341, %v1334
    // Predicated region
    $region30: #{generator_forward.1} parent=1 // pred_check
      _
    $region31: #{generator_forward.1} parent=1 // pred_check_branch
      %1344 = sbr.rel (0) target = $region33
    $region32: #{generator_forward.1} parent=1 // pred_region
      %s1346 = ssub.s32 896, 896
      %1347 = vsyncadd [#allocation3], %s1346
      %s1349 = sshll.u32 [#allocation2], 4
      %s1350 = int_to_ptr.vmem [resolvable:$true] %s1349
      %1352 = dma.vmem_to_hbm [thread:$0]  %s1350, 896, %s7, [#allocation3]
    $region33: #{generator_forward.1} parent=1 // pred_fallthru
      _
    // Predicated region
    $region34: #{generator_forward.1} parent=1 // pred_check
      _
    $region35: #{generator_forward.1} parent=1 // pred_check_branch
      %1354 = sbr.rel (0) target = $region37
    $region36: #{generator_forward.1} parent=1 // pred_region
      %1355 = dma.done [#allocation3], 896
    $region37: #{generator_forward.1} parent=1 // pred_fallthru
      _
    %1356 = vsyncpa [#allocation3], 1

</llo_original>
